<compile_context>
chip_gen: v6e
topology: v6e:2x2x1
jax: 0.10.0
libtpu: 0.0.40
codegen_flags: <defaults>
</compile_context>

<pallas_src>
import jax
import jax.numpy as jnp
from jax.experimental import pallas as pl
from jax.experimental.pallas import tpu as pltpu

k = 1
t = k * 1  # temperature, matches the PyTorch module

_LANE = 128
_SUB = 8
_SUBBLOCK_ELEMS = _SUB * _LANE  # 1024 elements == one f32 vreg tile


def _agg_loss_kernel(pos_ref, neg_ref, out_ref):
    # Blocks are (n_sub, 8, 128); compute in f32 regardless of input dtype
    # (v5e has no bf16 VPU/EUP; upcast is free under the DMA).
    p = pos_ref[...].astype(jnp.float32)
    n = neg_ref[...].astype(jnp.float32)

    x = n - p
    if t != 1:  # fold temperature as a single multiply (skipped when t == 1)
        x = x * (1.0 / t)

    # -log( exp(p/t) / (exp(p/t) + exp(n/t)) ) == softplus((n - p)/t), stable form:
    sp = jnp.maximum(x, 0.0) + jnp.log1p(jnp.exp(-jnp.abs(x)))

    # Reduce over the leading sub-block axis -> one (8,128) partial per tile.
    out_ref[...] = jnp.sum(sp, axis=0, keepdims=True)


def aggregation_function_loss(phi_positive, phi_negative,
                              *, max_subblocks_per_tile=256, verbose=False):
    """Pallas implementation of AggregationFunctionLoss.forward.

    phi_positive, phi_negative: same-shape arrays; leading dim is N (len()).
    Returns a scalar float32 loss.
    """
    assert phi_positive.shape == phi_negative.shape
    n_items = phi_positive.shape[0]  # len(phi_positive) in the PyTorch module
    total_elems = phi_positive.size

    # Flatten: the loss is a pure elementwise reduction, so retile lane-dense.
    p = phi_positive.reshape(-1)
    n = phi_negative.reshape(-1)

    n_sub_total = pl.cdiv(total_elems, _SUBBLOCK_ELEMS)   # number of (8,128) tiles
    n_sub_tile = min(max_subblocks_per_tile, n_sub_total) # (8,128)-tiles per block
    num_tiles = pl.cdiv(n_sub_total, n_sub_tile)
    padded = num_tiles * n_sub_tile * _SUBBLOCK_ELEMS
    pad = padded - total_elems
    if pad:
        # Sentinel padding: softplus((-1e30 - 0)/t) == 0 exactly in f32,
        # so padded slots contribute nothing to the sum.
        p = jnp.concatenate([p, jnp.zeros((pad,), p.dtype)])
        n = jnp.concatenate([n, jnp.full((pad,), -1e30, n.dtype)])

    p3 = p.reshape(num_tiles * n_sub_tile, _SUB, _LANE)
    n3 = n.reshape(num_tiles * n_sub_tile, _SUB, _LANE)

    itemsize = jnp.dtype(phi_positive.dtype).itemsize
    cost = pl.CostEstimate(
        flops=6 * padded,
        transcendentals=2 * padded,              # exp + log1p per element
        bytes_accessed=2 * padded * itemsize + num_tiles * _SUBBLOCK_ELEMS * 4,
    )

    partials = pl.pallas_call(
        _agg_loss_kernel,
        out_shape=jax.ShapeDtypeStruct((num_tiles, _SUB, _LANE), jnp.float32),
        grid_spec=pl.GridSpec(
            grid=(num_tiles,),
            in_specs=[
                pl.BlockSpec((n_sub_tile, _SUB, _LANE), lambda i: (i, 0, 0)),
                pl.BlockSpec((n_sub_tile, _SUB, _LANE), lambda i: (i, 0, 0)),
            ],
            out_specs=pl.BlockSpec((1, _SUB, _LANE), lambda i: (i, 0, 0)),
        ),
        compiler_params=pltpu.CompilerParams(
            dimension_semantics=("parallel",),       # tiles are independent
            vmem_limit_bytes=32 * 1024 * 1024,       # portable across v5e/v6e/v7x
        ),
        cost_estimate=cost,
    )(p3, n3)

    # Tiny final reduction + normalization by the FULL leading dim (not the block).
    loss = jnp.sum(partials) * (1.0 / n_items)

    if verbose:
        # The PyTorch module prints the loss; off by default since the host
        # print forces a device->host sync after every call.
        print("loss: ", loss)
    return loss


def _reference_loss(phi_positive, phi_negative):
    # Pure-JAX reference mirroring the PyTorch list-comprehension exactly.
    n = len(phi_positive)
    total = 0.0
    for i in range(n):
        ep = jnp.exp(phi_positive[i] / t)
        en = jnp.exp(phi_negative[i] / t)
        total = total + jnp.sum(-jnp.log(ep / (ep + en)))
    return total / n


if __name__ == "__main__":
    key = jax.random.PRNGKey(0)
    k1, k2, k3, k4 = jax.random.split(key, 4)

    # Case 1: small "native" shape — 8 positive/negative pairs of 32-dim scores.
    N, D = 8, 32
    phi_positive = jax.random.normal(k1, (N, D), dtype=jnp.float32)
    phi_negative = jax.random.normal(k2, (N, D), dtype=jnp.float32)
    loss = jax.block_until_ready(aggregation_function_loss(phi_positive, phi_negative))
    ref = jax.block_until_ready(_reference_loss(phi_positive, phi_negative))
    assert jnp.allclose(loss, ref, rtol=1e-5, atol=1e-5), (loss, ref)

    # Case 2: non-divisible size + multi-tile grid (exercises sentinel padding,
    # the parallel grid axis, and per-tile partial sums).
    N2, D2 = 16, 200
    pos2 = jax.random.normal(k3, (N2, D2), dtype=jnp.float32)
    neg2 = jax.random.normal(k4, (N2, D2), dtype=jnp.float32)
    loss2 = jax.block_until_ready(
        aggregation_function_loss(pos2, neg2, max_subblocks_per_tile=1))
    ref2 = jax.block_until_ready(_reference_loss(pos2, neg2))
    assert jnp.allclose(loss2, ref2, rtol=1e-5, atol=1e-5), (loss2, ref2)

    print("KERNEL_OK")
</pallas_src>

<mosaic_0001>
module attributes {stable_mosaic.version = 11 : i64} {
  func.func @_agg_loss_kernel(%arg0: i32, %arg1: memref<1x8x128xf32, #tpu.memory_space<vmem>>, %arg2: memref<1x8x128xf32, #tpu.memory_space<vmem>>, %arg3: memref<1x8x128xf32, #tpu.memory_space<vmem>>) attributes {dimension_semantics = [#tpu.dimension_semantics<parallel>], iteration_bounds = array<i64: 1>, scalar_prefetch = 0 : i64, scratch_operands = 0 : i64, tpu.core_type = #tpu.core_type<tc>, window_params = [{transform_indices = @transform_0, window_bounds = array<i64: 1, 8, 128>}, {transform_indices = @transform_1, window_bounds = array<i64: 1, 8, 128>}, {transform_indices = @transform_2, window_bounds = array<i64: 1, 8, 128>}]} {
    %c0 = arith.constant 0 : index
    %c0_0 = arith.constant 0 : index
    %c0_1 = arith.constant 0 : index
    %0 = vector.load %arg1[%c0, %c0_0, %c0_1] : memref<1x8x128xf32, #tpu.memory_space<vmem>>, vector<1x8x128xf32>
    %c0_2 = arith.constant 0 : index
    %c0_3 = arith.constant 0 : index
    %c0_4 = arith.constant 0 : index
    %1 = vector.load %arg2[%c0_2, %c0_3, %c0_4] : memref<1x8x128xf32, #tpu.memory_space<vmem>>, vector<1x8x128xf32>
    %2 = arith.subf %1, %0 : vector<1x8x128xf32>
    %cst = arith.constant 0.000000e+00 : f32
    %3 = vector.broadcast %cst : f32 to vector<1x8x128xf32>
    %4 = arith.maximumf %2, %3 : vector<1x8x128xf32>
    %5 = math.absf %2 : vector<1x8x128xf32>
    %cst_5 = arith.constant 0.000000e+00 : f32
    %6 = vector.broadcast %cst_5 : f32 to vector<1x8x128xf32>
    %7 = arith.subf %6, %5 : vector<1x8x128xf32>
    %8 = math.exp %7 : vector<1x8x128xf32>
    %9 = math.log1p %8 : vector<1x8x128xf32>
    %10 = arith.addf %4, %9 : vector<1x8x128xf32>
    %cst_6 = arith.constant dense<0.000000e+00> : vector<8x128xf32>
    %11 = vector.multi_reduction <add>, %10, %cst_6 [0] : vector<1x8x128xf32> to vector<8x128xf32>
    %12 = vector.shape_cast %11 : vector<8x128xf32> to vector<1x8x128xf32>
    %c0_7 = arith.constant 0 : index
    %c0_8 = arith.constant 0 : index
    %c0_9 = arith.constant 0 : index
    %13 = vector.load %arg3[%c0_7, %c0_8, %c0_9] : memref<1x8x128xf32, #tpu.memory_space<vmem>>, vector<1x8x128xf32>
    tpu.vector_store %arg3[%c0_7, %c0_8, %c0_9], %12 {strides = array<i32>} : memref<1x8x128xf32, #tpu.memory_space<vmem>>, vector<1x8x128xf32>,
    return
  }
  func.func @transform_0(%arg0: i32) -> (i32, i32, i32) {
    %c0_i32 = arith.constant 0 : i32
    %c0_i32_0 = arith.constant 0 : i32
    %c0_i32_1 = arith.constant 0 : i32
    return %arg0, %c0_i32, %c0_i32_0 : i32, i32, i32
  }
  func.func @transform_1(%arg0: i32) -> (i32, i32, i32) {
    %c0_i32 = arith.constant 0 : i32
    %c0_i32_0 = arith.constant 0 : i32
    %c0_i32_1 = arith.constant 0 : i32
    return %arg0, %c0_i32, %c0_i32_0 : i32, i32, i32
  }
  func.func @transform_2(%arg0: i32) -> (i32, i32, i32) {
    %c0_i32 = arith.constant 0 : i32
    %c0_i32_0 = arith.constant 0 : i32
    %c0_i32_1 = arith.constant 0 : i32
    return %arg0, %c0_i32, %c0_i32_0 : i32, i32, i32
  }
}

</mosaic_0001>

<llo_original>
// kernel: tpu_custom_call.1
$region0: #{tpu_custom_call.1}
  #allocation0 [shape = 'u32[]', space=smem, size = 0x4, offset = 0x4, fixed_abs, tag = 'smem constant byte address 0x4 - core index']
  #allocation1 [shape = 'u32[144,128]{1,0:T(1,128)}', space=vmem, size = 0x12000, scoped, tag = 'internal scratch']
  %s0 = inlined_call_operand.hbm [shape: f32[1,8,128], index: 0, kind: input, shape index: {}]
  %s1 = inlined_call_operand.hbm [shape: f32[1,8,128], index: 1, kind: input, shape index: {}]
  %s2 = inlined_call_operand.hbm [shape: f32[1,8,128], index: 2, kind: output, shape index: {}]
  %s3 = sld [smem:[#allocation0]]
  $region26: #{tpu_custom_call.1} parent=0
    _
  %s5 = ssub.s32 1, %s3
  %s6 = scalar_select 0, %s5, %s3
  $region1: #{tpu_custom_call.1} parent=0
    #allocation2 [shape = 'u8[4096]{0}', space=vmem, size = 0x1000, scoped, tag = 'input window, operand 0, single buffered']
    #allocation3 [shape = 's32[1]{0}', space=sflag, size = 0x4, scoped, tag = 'scoped memory for tpu_custom_call.1']
    #allocation4 [shape = 's32[1]{0}', space=sflag, size = 0x4, scoped, tag = 'scoped memory for tpu_custom_call.1']
    #allocation5 [shape = 'u8[4096]{0}', space=vmem, size = 0x1000, scoped, tag = 'input window, operand 1, single buffered']
    #allocation6 [shape = 's32[1]{0}', space=sflag, size = 0x4, scoped, tag = 'scoped memory for tpu_custom_call.1']
    #allocation7 [shape = 'u8[4096]{0}', space=vmem, size = 0x1000, scoped, tag = 'output window, operand 0, single buffered']
    %7 = vsyncpa [#allocation3], 0
    %8 = vsyncpa [#allocation6], 0
    %9 = vsyncpa [#allocation4], 0
    // Predicated region
    $region2: #{tpu_custom_call.1} parent=1 // pred_check
      _
    $region3: #{tpu_custom_call.1} parent=1 // pred_check_branch
      %11 = sbr.rel (0) target = $region5
    $region4: #{tpu_custom_call.1} parent=1 // pred_region
      %s13 = ssub.s32 128, 128
      %14 = vsyncadd [#allocation3], %s13
      %s16 = sshll.u32 [#allocation2], 4
      %s17 = int_to_ptr.vmem [resolvable:$true] %s16
      %19 = dma.hbm_to_vmem [thread:$0]  %s0, 128, %s17, [#allocation3]
    $region5: #{tpu_custom_call.1} parent=1 // pred_fallthru
      _
    // Predicated region
    $region6: #{tpu_custom_call.1} parent=1 // pred_check
      _
    $region7: #{tpu_custom_call.1} parent=1 // pred_check_branch
      %21 = sbr.rel (0) target = $region9
    $region8: #{tpu_custom_call.1} parent=1 // pred_region
      %s23 = ssub.s32 128, 128
      %24 = vsyncadd [#allocation6], %s23
      %s26 = sshll.u32 [#allocation5], 4
      %s27 = int_to_ptr.vmem [resolvable:$true] %s26
      %29 = dma.hbm_to_vmem [thread:$0]  %s1, 128, %s27, [#allocation6]
    $region9: #{tpu_custom_call.1} parent=1 // pred_fallthru
      _
    // Predicated region
    $region10: #{tpu_custom_call.1} parent=1 // pred_check
      _
    $region11: #{tpu_custom_call.1} parent=1 // pred_check_branch
      %31 = sbr.rel (0) target = $region13
    $region12: #{tpu_custom_call.1} parent=1 // pred_region
      %32 = dma.done [#allocation3], 128
    $region13: #{tpu_custom_call.1} parent=1 // pred_fallthru
      _
    // Predicated region
    $region14: #{tpu_custom_call.1} parent=1 // pred_check
      _
    $region15: #{tpu_custom_call.1} parent=1 // pred_check_branch
      %34 = sbr.rel (0) target = $region17
    $region16: #{tpu_custom_call.1} parent=1 // pred_region
      %35 = dma.done [#allocation6], 128
    $region17: #{tpu_custom_call.1} parent=1 // pred_fallthru
      _
    %v36 = vld [vmem:[#allocation2] sm:$0xff]
    %v37 = vld [vmem:[#allocation5] sm:$0xff]
    %v38 = vsub.f32 %v37, %v36
    %v39 = vmax.f32 %v38, 0.0
    %v40 = vand.u32 2147483647, %v38
    %v41 = vsub.f32 0.0, %v40
    %v42 = vmul.f32 %v41, 1.442695
    %v43 = vpow.pop %v42
    %v44 = vadd.f32 %v43, 1.0
    %v45 = vlog2.pop %v44
    %v46 = vmul.f32 %v45, 0.6931472
    %v47 = vmul.f32 -0.5, %v43
    %v48 = vadd.f32 %v47, 1.0
    %v49 = vmul.f32 %v48, %v43
    %v50 = vand.u32 2147483647, %v43
    %vm51 = vcmp.lt.f32.partialorder %v50, 0.0004427343
    %v52 = vsel %vm51, %v49, %v46
    %v53 = vadd.f32 %v39, %v52
    %v54 = vadd.f32 %v53, 0.0
    %55 = vst [vmem:[#allocation7] sm:$0xff] %v54
    // Predicated region
    $region18: #{tpu_custom_call.1} parent=1 // pred_check
      _
    $region19: #{tpu_custom_call.1} parent=1 // pred_check_branch
      %57 = sbr.rel (0) target = $region21
    $region20: #{tpu_custom_call.1} parent=1 // pred_region
      %s59 = ssub.s32 128, 128
      %60 = vsyncadd [#allocation4], %s59
      %s62 = sshll.u32 [#allocation7], 4
      %s63 = int_to_ptr.vmem [resolvable:$true] %s62
      %65 = dma.vmem_to_hbm [thread:$0]  %s63, 128, %s2, [#allocation4]
    $region21: #{tpu_custom_call.1} parent=1 // pred_fallthru
      _
    // Predicated region
    $region22: #{tpu_custom_call.1} parent=1 // pred_check
      _
    $region23: #{tpu_custom_call.1} parent=1 // pred_check_branch
      %67 = sbr.rel (0) target = $region25
    $region24: #{tpu_custom_call.1} parent=1 // pred_region
      %68 = dma.done [#allocation4], 128
    $region25: #{tpu_custom_call.1} parent=1 // pred_fallthru
      _
    %69 = vsyncpa [#allocation3], 1
    %70 = vsyncpa [#allocation6], 1
    %71 = vsyncpa [#allocation4], 1

</llo_original>
